<compile_context>
chip_gen: v7x
topology: tpu7x:2x2x1
jax: 0.10.0
libtpu: 0.0.40
codegen_flags: <defaults>
</compile_context>

<pallas_src>
import functools

import jax
import jax.numpy as jnp
from jax.experimental import pallas as pl
from jax.experimental.pallas import tpu as pltpu

EPS = 1e-8
MOMENTUM = 0.9  # running-stat bookkeeping only (stateful side effect, done as glue)


# --------------------------------------------------------------------------- #
# Kernels
# --------------------------------------------------------------------------- #
def bn2d_onepass_kernel(x_ref, gamma_ref, beta_ref, o_ref, *, m_total, eps):
    """Resident single pass: stats + normalization from one VMEM copy of x.

    x_ref / o_ref: (d0, c_tile, L); gamma_ref / beta_ref: (c_tile, 1).
    """
    x = x_ref[...].astype(jnp.float32)

    # Per-channel sum / sum-of-squares: lane (XLU) reduce first, then the cheap
    # cross-vreg reduce over the leading dim.
    s = jnp.sum(jnp.sum(x, axis=2, keepdims=True), axis=0, keepdims=True)
    sq = jnp.sum(jnp.sum(x * x, axis=2, keepdims=True), axis=0, keepdims=True)

    mean = s * (1.0 / m_total)
    # unbiased variance (torch.var default): (sum_sq - M*mean^2) / (M-1)
    var = (sq - mean * s) * (1.0 / max(m_total - 1, 1))
    var = jnp.maximum(var, 0.0)            # guard rsqrt against cancellation
    inv_std = jax.lax.rsqrt(var + eps)

    gamma = gamma_ref[...].astype(jnp.float32)[None, :, :]   # (1, c_tile, 1)
    beta = beta_ref[...].astype(jnp.float32)[None, :, :]
    scale = gamma * inv_std
    shift = beta - mean * scale
    o_ref[...] = (x * scale + shift).astype(o_ref.dtype)


def bn2d_twopass_kernel(x_ref, gamma_ref, beta_ref, o_ref,
                        sum_ref, sq_ref, scale_ref, shift_ref,
                        *, m_total, eps):
    """Streaming two-phase pass.

    x_ref / o_ref: (c_tile, hw_tile); gamma/beta & scratch: (c_tile, 1).
    Grid = (c_blocks, phase, d0, hw_blocks).
    """
    ph = pl.program_id(1)
    ni = pl.program_id(2)
    hi = pl.program_id(3)
    first_tile = jnp.logical_and(ni == 0, hi == 0)

    # ---------------- phase 0: per-channel sum / sum-of-squares ----------------
    @pl.when(jnp.logical_and(ph == 0, first_tile))
    def _init():
        sum_ref[...] = jnp.zeros_like(sum_ref)
        sq_ref[...] = jnp.zeros_like(sq_ref)

    @pl.when(ph == 0)
    def _accumulate():
        # TODO(synk): for channels with >~1e7 elements a chunked/two-level f32
        # accumulation would improve precision; single f32 accumulators here.
        x = x_ref[...].astype(jnp.float32)
        sum_ref[...] += jnp.sum(x, axis=1, keepdims=True)
        sq_ref[...] += jnp.sum(x * x, axis=1, keepdims=True)

    # ---- phase 1, first tile: finalize stats, fold gamma/beta into scale/shift ----
    @pl.when(jnp.logical_and(ph == 1, first_tile))
    def _finalize():
        mean = sum_ref[...] * (1.0 / m_total)
        var = (sq_ref[...] - mean * sum_ref[...]) * (1.0 / max(m_total - 1, 1))
        var = jnp.maximum(var, 0.0)        # guard rsqrt against cancellation
        inv_std = jax.lax.rsqrt(var + eps)
        scale = gamma_ref[...].astype(jnp.float32) * inv_std
        scale_ref[...] = scale
        shift_ref[...] = beta_ref[...].astype(jnp.float32) - mean * scale

    # ---------------- phase 1: normalize (one mul + one add per element) ----------------
    @pl.when(ph == 1)
    def _normalize():
        x = x_ref[...].astype(jnp.float32)
        o_ref[...] = (x * scale_ref[...] + shift_ref[...]).astype(o_ref.dtype)


# --------------------------------------------------------------------------- #
# Tile / VMEM helpers
# --------------------------------------------------------------------------- #
def _vmem_config():
    """(vmem_limit_bytes, live-VMEM tile budget) per TPU generation."""
    kind = ""
    try:
        kind = jax.devices()[0].device_kind.lower()
    except Exception:
        pass
    if "v2" in kind or "v3" in kind:
        return 12 * 1024 * 1024, 6 * 1024 * 1024
    if "v5 lite" in kind or "v5e" in kind or "v6" in kind or "trillium" in kind:
        # 128 MiB physical VMEM: raise the scoped limit and allow bigger tiles.
        return 96 * 1024 * 1024, 64 * 1024 * 1024
    # v7x (64 MiB physical per TC) and unknown chips: stay conservative.
    return 48 * 1024 * 1024, 24 * 1024 * 1024


def _pick_divisor_tile(dim, align, cap):
    """Largest multiple of `align` that divides `dim` and is <= cap.
    If `dim` is not a multiple of `align`, fall back to the full dim
    (a full-extent block is always a legal block size)."""
    if dim % align != 0:
        return dim
    cap = min(cap, dim)
    best = align
    t = align
    while t <= cap:
        if dim % t == 0:
            best = t
        t += align
    return best


def _pick_c_tile(c, align, cap):
    """Channel tile: dtype-aligned, divides C, and leaves >= 2 channel blocks
    whenever C allows so the 'parallel' axis shards across both v7x cores."""
    if c % align != 0:
        return c
    if c >= 2 * align:
        cap = min(cap, (c // 2) // align * align)
    return _pick_divisor_tile(c, align, max(align, cap))


def _single_pass_c_tile(c, align, d0, lanes, budget_bytes):
    """Largest legal channel tile whose resident block fits the VMEM budget,
    preferring >= 2 channel blocks.  The 8x factor covers double-buffered
    input + output plus f32 working temporaries.  None -> use two-pass path."""
    if c % align != 0:
        cands = [c]
    else:
        cands = [t for t in range(align, c + 1, align) if c % t == 0]
        multi = [t for t in cands if c // t >= 2]
        if multi:
            cands = multi
    for t in sorted(cands, reverse=True):
        if 8 * d0 * t * lanes * 4 <= budget_bytes:
            return t
    return None


# --------------------------------------------------------------------------- #
# Wrapper
# --------------------------------------------------------------------------- #
def bn2d_forward(x, gamma, beta, eps=EPS, force_two_pass=False):
    """x: (N, C, H, W); gamma/beta broadcastable to (1, C, 1, 1). Returns (N, C, H, W)."""
    n, c, h, w = x.shape
    hw = h * w
    m_total = n * hw
    itemsize = x.dtype.itemsize
    align_c = {4: 8, 2: 16, 1: 32}.get(itemsize, 8)   # dtype-aware sublane align

    g = jnp.reshape(gamma, (c, 1))
    b = jnp.reshape(beta, (c, 1))

    # ---- layout: keep the lane axis dense (multiple of 128) ----
    if hw % 128 == 0:
        x3 = x.reshape(n, c, hw)        # free view of contiguous NCHW (no transpose)
        d0, lanes = n, hw
        relayout = False
    else:
        # Small / odd spatial: fold N into the lane axis and zero-pad to a
        # multiple of 128.  Zeros don't perturb the sums (true m_total is used);
        # padded outputs are sliced off below.
        l0 = n * hw
        lpad = ((l0 + 127) // 128) * 128
        xt = jnp.transpose(x, (1, 0, 2, 3)).reshape(c, l0)
        xt = jnp.pad(xt, ((0, 0), (0, lpad - l0)))
        x3 = xt.reshape(1, c, lpad)
        d0, lanes = 1, lpad
        relayout = True

    vmem_limit, budget = _vmem_config()

    c_tile_sp = None if force_two_pass else _single_pass_c_tile(
        c, align_c, d0, lanes, budget)

    if c_tile_sp is not None:
        # -------- single-pass resident path: 1 HBM read + 1 HBM write --------
        kernel = functools.partial(bn2d_onepass_kernel, m_total=m_total, eps=eps)
        out3 = pl.pallas_call(
            kernel,
            out_shape=jax.ShapeDtypeStruct((d0, c, lanes), x.dtype),
            grid=(c // c_tile_sp,),
            in_specs=[
                pl.BlockSpec((d0, c_tile_sp, lanes), lambda ci: (0, ci, 0)),
                pl.BlockSpec((c_tile_sp, 1), lambda ci: (ci, 0)),
                pl.BlockSpec((c_tile_sp, 1), lambda ci: (ci, 0)),
            ],
            out_specs=pl.BlockSpec((d0, c_tile_sp, lanes), lambda ci: (0, ci, 0)),
            compiler_params=pltpu.CompilerParams(
                dimension_semantics=("parallel",),
                vmem_limit_bytes=vmem_limit,
            ),
        )(x3, g, b)
    else:
        # -------- two-pass streaming path: 2 HBM reads + 1 HBM write --------
        c_tile = _pick_c_tile(c, align_c, 256)
        block_target = min(budget // 6, 8 * 1024 * 1024)      # ~2-8 MiB blocks
        lane_cap = max(128, (block_target // (c_tile * itemsize)) // 128 * 128)
        hw_tile = _pick_divisor_tile(lanes, 128, lane_cap)
        grid = (c // c_tile, 2, d0, lanes // hw_tile)

        def x_map(ci, ph, ni, hi):
            return (ni, ci, hi)

        def out_map(ci, ph, ni, hi):
            # Phase 0 pins the output to the block phase 1 writes first, so the
            # output block index never changes while its buffer is unwritten
            # -> no garbage writebacks during the stats pass.
            return (ni * ph, ci, hi * ph)

        def param_map(ci, ph, ni, hi):
            return (ci, 0)

        kernel = functools.partial(bn2d_twopass_kernel, m_total=m_total, eps=eps)
        out3 = pl.pallas_call(
            kernel,
            out_shape=jax.ShapeDtypeStruct((d0, c, lanes), x.dtype),
            grid=grid,
            in_specs=[
                pl.BlockSpec((pl.Squeezed(), c_tile, hw_tile), x_map),
                pl.BlockSpec((c_tile, 1), param_map),
                pl.BlockSpec((c_tile, 1), param_map),
            ],
            out_specs=pl.BlockSpec((pl.Squeezed(), c_tile, hw_tile), out_map),
            scratch_shapes=[
                pltpu.VMEM((c_tile, 1), jnp.float32),  # per-channel sum
                pltpu.VMEM((c_tile, 1), jnp.float32),  # per-channel sum of squares
                pltpu.VMEM((c_tile, 1), jnp.float32),  # scale = gamma * rsqrt(var+eps)
                pltpu.VMEM((c_tile, 1), jnp.float32),  # shift = beta - mean * scale
            ],
            compiler_params=pltpu.CompilerParams(
                dimension_semantics=("parallel", "arbitrary", "arbitrary", "arbitrary"),
                vmem_limit_bytes=vmem_limit,
            ),
        )(x3, g, b)

    if relayout:
        out = (out3.reshape(c, lanes)[:, :m_total]
               .reshape(c, n, h, w).transpose(1, 0, 2, 3))
    else:
        out = out3.reshape(n, c, h, w)
    return out


def bn2d_reference(x, gamma, beta, eps=EPS):
    mean = jnp.mean(x, axis=(0, 2, 3), keepdims=True)
    m = x.shape[0] * x.shape[2] * x.shape[3]
    var = jnp.sum((x - mean) ** 2, axis=(0, 2, 3), keepdims=True) / max(m - 1, 1)
    return (x - mean) / jnp.sqrt(var + eps) * gamma + beta


if __name__ == "__main__":
    num_features = 4
    key = jax.random.PRNGKey(0)
    k1, k2 = jax.random.split(key)

    # Deterministic parameter init, matching the module's __init__:
    gamma = jnp.ones((1, num_features, 1, 1), dtype=jnp.float32)
    beta = jnp.zeros((1, num_features, 1, 1), dtype=jnp.float32)
    running_mean = jnp.zeros((1, num_features, 1, 1), dtype=jnp.float32)
    running_var = jnp.zeros((1, num_features, 1, 1), dtype=jnp.float32)

    # Primary shape: lane-dense spatial (16x16) -> single-pass resident path.
    x = jax.random.normal(k1, (2, num_features, 16, 16), dtype=jnp.float32)
    out = jax.block_until_ready(bn2d_forward(x, gamma, beta))
    ref = bn2d_reference(x, gamma, beta)
    assert jnp.allclose(out, ref, atol=1e-5, rtol=1e-5), "single-pass mismatch"

    # Same data through the streaming two-pass path (used for large inputs).
    out2 = jax.block_until_ready(bn2d_forward(x, gamma, beta, force_two_pass=True))
    assert jnp.allclose(out2, ref, atol=1e-5, rtol=1e-5), "two-pass mismatch"

    # Non-128-multiple spatial (7x7) -> lane-folding + zero-pad path.
    xs = jax.random.normal(k2, (2, num_features, 7, 7), dtype=jnp.float32)
    out3 = jax.block_until_ready(bn2d_forward(xs, gamma, beta))
    ref3 = bn2d_reference(xs, gamma, beta)
    assert jnp.allclose(out3, ref3, atol=1e-5, rtol=1e-5), "padded-path mismatch"

    # Running-buffer update is a stateful module side effect; plain-JAX glue.
    batch_mean = jnp.mean(x, axis=(0, 2, 3), keepdims=True)
    m = x.shape[0] * x.shape[2] * x.shape[3]
    batch_var = jnp.sum((x - batch_mean) ** 2, axis=(0, 2, 3), keepdims=True) / max(m - 1, 1)
    running_mean = (1 - MOMENTUM) * running_mean + MOMENTUM * batch_mean
    running_var = (1 - MOMENTUM) * running_var + MOMENTUM * batch_var

    print("KERNEL_OK")
</pallas_src>

<mosaic_0001>
module attributes {stable_mosaic.version = 11 : i64} {
  func.func @bn2d_onepass_kernel(%arg0: i32, %arg1: memref<2x4x256xf32, #tpu.memory_space<vmem>>, %arg2: memref<4x1xf32, #tpu.memory_space<vmem>>, %arg3: memref<4x1xf32, #tpu.memory_space<vmem>>, %arg4: memref<2x4x256xf32, #tpu.memory_space<vmem>>) attributes {dimension_semantics = [#tpu.dimension_semantics<parallel>], iteration_bounds = array<i64: 1>, scalar_prefetch = 0 : i64, scratch_operands = 0 : i64, tpu.core_type = #tpu.core_type<tc>, window_params = [{transform_indices = @transform_0, window_bounds = array<i64: 2, 4, 256>}, {transform_indices = @transform_1, window_bounds = array<i64: 4, 1>}, {transform_indices = @transform_2, window_bounds = array<i64: 4, 1>}, {transform_indices = @transform_3, window_bounds = array<i64: 2, 4, 256>}]} {
    %c0 = arith.constant 0 : index
    %c0_0 = arith.constant 0 : index
    %c0_1 = arith.constant 0 : index
    %0 = vector.load %arg1[%c0, %c0_0, %c0_1] : memref<2x4x256xf32, #tpu.memory_space<vmem>>, vector<2x4x256xf32>
    %cst = arith.constant dense<0.000000e+00> : vector<2x4xf32>
    %1 = vector.multi_reduction <add>, %0, %cst [2] : vector<2x4x256xf32> to vector<2x4xf32>
    %2 = vector.shape_cast %1 : vector<2x4xf32> to vector<2x4x1xf32>
    %cst_2 = arith.constant dense<0.000000e+00> : vector<4x1xf32>
    %3 = vector.multi_reduction <add>, %2, %cst_2 [0] : vector<2x4x1xf32> to vector<4x1xf32>
    %4 = vector.shape_cast %3 : vector<4x1xf32> to vector<1x4x1xf32>
    %5 = arith.mulf %0, %0 : vector<2x4x256xf32>
    %cst_3 = arith.constant dense<0.000000e+00> : vector<2x4xf32>
    %6 = vector.multi_reduction <add>, %5, %cst_3 [2] : vector<2x4x256xf32> to vector<2x4xf32>
    %7 = vector.shape_cast %6 : vector<2x4xf32> to vector<2x4x1xf32>
    %cst_4 = arith.constant dense<0.000000e+00> : vector<4x1xf32>
    %8 = vector.multi_reduction <add>, %7, %cst_4 [0] : vector<2x4x1xf32> to vector<4x1xf32>
    %9 = vector.shape_cast %8 : vector<4x1xf32> to vector<1x4x1xf32>
    %cst_5 = arith.constant 0.001953125 : f32
    %10 = vector.broadcast %cst_5 : f32 to vector<1x4x1xf32>
    %11 = arith.mulf %4, %10 : vector<1x4x1xf32>
    %12 = arith.mulf %11, %4 : vector<1x4x1xf32>
    %13 = arith.subf %9, %12 : vector<1x4x1xf32>
    %cst_6 = arith.constant 0.00195694715 : f32
    %14 = vector.broadcast %cst_6 : f32 to vector<1x4x1xf32>
    %15 = arith.mulf %13, %14 : vector<1x4x1xf32>
    %cst_7 = arith.constant 0.000000e+00 : f32
    %16 = vector.broadcast %cst_7 : f32 to vector<1x4x1xf32>
    %17 = arith.maximumf %15, %16 : vector<1x4x1xf32>
    %cst_8 = arith.constant 9.99999993E-9 : f32
    %18 = vector.broadcast %cst_8 : f32 to vector<1x4x1xf32>
    %19 = arith.addf %17, %18 : vector<1x4x1xf32>
    %20 = math.rsqrt %19 : vector<1x4x1xf32>
    %c0_9 = arith.constant 0 : index
    %c0_10 = arith.constant 0 : index
    %21 = vector.load %arg2[%c0_9, %c0_10] : memref<4x1xf32, #tpu.memory_space<vmem>>, vector<4x1xf32>
    %22 = vector.shape_cast %21 : vector<4x1xf32> to vector<1x4x1xf32>
    %c0_11 = arith.constant 0 : index
    %c0_12 = arith.constant 0 : index
    %23 = vector.load %arg3[%c0_11, %c0_12] : memref<4x1xf32, #tpu.memory_space<vmem>>, vector<4x1xf32>
    %24 = vector.shape_cast %23 : vector<4x1xf32> to vector<1x4x1xf32>
    %25 = arith.mulf %22, %20 : vector<1x4x1xf32>
    %26 = arith.mulf %11, %25 : vector<1x4x1xf32>
    %27 = arith.subf %24, %26 : vector<1x4x1xf32>
    %28 = vector.broadcast %25 : vector<1x4x1xf32> to vector<2x4x256xf32>
    %29 = arith.mulf %0, %28 : vector<2x4x256xf32>
    %30 = vector.broadcast %27 : vector<1x4x1xf32> to vector<2x4x256xf32>
    %31 = arith.addf %29, %30 : vector<2x4x256xf32>
    %c0_13 = arith.constant 0 : index
    %c0_14 = arith.constant 0 : index
    %c0_15 = arith.constant 0 : index
    %32 = vector.load %arg4[%c0_13, %c0_14, %c0_15] : memref<2x4x256xf32, #tpu.memory_space<vmem>>, vector<2x4x256xf32>
    tpu.vector_store %arg4[%c0_13, %c0_14, %c0_15], %31 {strides = array<i32>} : memref<2x4x256xf32, #tpu.memory_space<vmem>>, vector<2x4x256xf32>,
    return
  }
  func.func @transform_0(%arg0: i32) -> (i32, i32, i32) {
    %c0_i32 = arith.constant 0 : i32
    %c0_i32_0 = arith.constant 0 : i32
    %c0_i32_1 = arith.constant 0 : i32
    return %c0_i32, %arg0, %c0_i32_0 : i32, i32, i32
  }
  func.func @transform_1(%arg0: i32) -> (i32, i32) {
    %c0_i32 = arith.constant 0 : i32
    %c0_i32_0 = arith.constant 0 : i32
    return %arg0, %c0_i32 : i32, i32
  }
  func.func @transform_2(%arg0: i32) -> (i32, i32) {
    %c0_i32 = arith.constant 0 : i32
    %c0_i32_0 = arith.constant 0 : i32
    return %arg0, %c0_i32 : i32, i32
  }
  func.func @transform_3(%arg0: i32) -> (i32, i32, i32) {
    %c0_i32 = arith.constant 0 : i32
    %c0_i32_0 = arith.constant 0 : i32
    %c0_i32_1 = arith.constant 0 : i32
    return %c0_i32, %arg0, %c0_i32_0 : i32, i32, i32
  }
}

</mosaic_0001>

<llo_original>
// kernel: tpu_custom_call.1
$region0: #{tpu_custom_call.1}
  #allocation0 [shape = 'u32[]', space=smem, size = 0x4, offset = 0x4, fixed_abs, tag = 'smem constant byte address 0x4 - core index']
  #allocation1 [shape = 'u32[144,128]{1,0:T(1,128)}', space=vmem, size = 0x12000, scoped, tag = 'internal scratch']
  %s0 = inlined_call_operand.hbm [shape: f32[2,4,256], index: 0, kind: input, shape index: {}]
  %s1 = inlined_call_operand.vmem [shape: f32[4,1], index: 1, kind: input, shape index: {}]
  %s2 = inlined_call_operand.vmem [shape: f32[4,1], index: 2, kind: input, shape index: {}]
  %s3 = inlined_call_operand.hbm [shape: f32[2,4,256], index: 3, kind: output, shape index: {}]
  %s4 = sld [smem:[#allocation0]]
  $region26: #{tpu_custom_call.1} parent=0
    _
  %s6 = ssub.s32 1, %s4
  %s7 = scalar_select 0, %s6, %s4
  $region1: #{tpu_custom_call.1} parent=0
    #allocation2 [shape = 'u8[8192]{0}', space=vmem, size = 0x2000, scoped, tag = 'input window, operand 0, single buffered']
    #allocation3 [shape = 's32[1]{0}', space=sflag, size = 0x4, scoped, tag = 'scoped memory for tpu_custom_call.1']
    #allocation4 [shape = 's32[1]{0}', space=sflag, size = 0x4, scoped, tag = 'scoped memory for tpu_custom_call.1']
    #allocation5 [shape = 'u8[8192]{0}', space=vmem, size = 0x2000, scoped, tag = 'output window, operand 0, single buffered']
    %8 = vsyncpa [#allocation3], 0
    %9 = vsyncpa [#allocation4], 0
    // Predicated region
    $region2: #{tpu_custom_call.1} parent=1 // pred_check
      _
    $region3: #{tpu_custom_call.1} parent=1 // pred_check_branch
      %11 = sbr.rel (0) target = $region5
    $region4: #{tpu_custom_call.1} parent=1 // pred_region
      %s13 = ssub.s32 256, 256
      %14 = vsyncadd [#allocation3], %s13
      %s15 = sshll.u32 [#allocation2], 4
      %s16 = int_to_ptr.vmem [resolvable:$true] %s15
      %21 = dma.hbm_to_vmem [thread:$0]  %s0, 256, %s16, [#allocation3], 128, 128, 8
    $region5: #{tpu_custom_call.1} parent=1 // pred_fallthru
      _
    // Predicated region
    $region6: #{tpu_custom_call.1} parent=1 // pred_check
      _
    $region7: #{tpu_custom_call.1} parent=1 // pred_check_branch
      %23 = sbr.rel (0) target = $region9
    $region8: #{tpu_custom_call.1} parent=1 // pred_region
      _
    $region9: #{tpu_custom_call.1} parent=1 // pred_fallthru
      _
    // Predicated region
    $region10: #{tpu_custom_call.1} parent=1 // pred_check
      _
    $region11: #{tpu_custom_call.1} parent=1 // pred_check_branch
      %25 = sbr.rel (0) target = $region13
    $region12: #{tpu_custom_call.1} parent=1 // pred_region
      _
    $region13: #{tpu_custom_call.1} parent=1 // pred_fallthru
      _
    // Predicated region
    $region14: #{tpu_custom_call.1} parent=1 // pred_check
      _
    $region15: #{tpu_custom_call.1} parent=1 // pred_check_branch
      %27 = sbr.rel (0) target = $region17
    $region16: #{tpu_custom_call.1} parent=1 // pred_region
      %28 = dma.done [#allocation3], 256
    $region17: #{tpu_custom_call.1} parent=1 // pred_fallthru
      _
    %v29 = vld [vmem:[#allocation2] sm:$0xff]
    %v30 = vld [vmem:[#allocation2 + $0x8] sm:$0xff]
    %v33 = vcombine.high %v29, %v29
    %v34 = vcombine.high %v30, %v30
    %vm37 = vcmask 1043456
    %v38 = vsel %vm37, %v29, 0.0
    %v39 = vsel %vm37, %v33, 0.0
    %v40 = vadd.f32 %v38, %v39
    %41 = vadd.xlane.f32.xlu0 %v40
    %v42 = vpop.xlane.xlu0 %41
    %v43 = vsel %vm37, %v30, 0.0
    %v44 = vsel %vm37, %v34, 0.0
    %v45 = vadd.f32 %v43, %v44
    %46 = vadd.xlane.f32.xlu0 %v45
    %v47 = vpop.xlane.xlu0 %46
    %v48 = vsel %vm37, %v42, 0.0
    %v49 = vsel %vm37, %v47, 0.0
    %v50 = vadd.f32 %v48, %v49
    %v51 = vmul.f32 %v29, %v29
    %v52 = vmul.f32 %v30, %v30
    %v55 = vcombine.high %v51, %v51
    %v56 = vcombine.high %v52, %v52
    %v59 = vsel %vm37, %v51, 0.0
    %v60 = vsel %vm37, %v55, 0.0
    %v61 = vadd.f32 %v59, %v60
    %62 = vadd.xlane.f32.xlu0 %v61
    %v63 = vpop.xlane.xlu0 %62
    %v64 = vsel %vm37, %v52, 0.0
    %v65 = vsel %vm37, %v56, 0.0
    %v66 = vadd.f32 %v64, %v65
    %67 = vadd.xlane.f32.xlu0 %v66
    %v68 = vpop.xlane.xlu0 %67
    %v69 = vsel %vm37, %v63, 0.0
    %v70 = vsel %vm37, %v68, 0.0
    %v71 = vadd.f32 %v69, %v70
    %v72 = vmul.f32 %v50, 0.001953125
    %v73 = vmul.f32 %v72, %v50
    %v74 = vsub.f32 %v71, %v73
    %v75 = vmul.f32 %v74, 0.0019569471
    %v76 = vmax.f32 %v75, 0.0
    %v77 = vadd.f32 %v76, 1e-08
    %v78 = vrsqrt.pop %v77
    %v79 = vld [vmem:[%s1] sm:$0xf]
    %v80 = vld [vmem:[%s2] sm:$0xf]
    %v81 = vmul.f32 %v79, %v78
    %v82 = vmul.f32 %v72, %v81
    %v83 = vsub.f32 %v80, %v82
    %85 = vset.pattern.permute.xlu0 0
    %86 = vperm.xlu0 %85, %v81
    %v87 = vpop.permute.xlu0 %86
    %v89 = vunpack.c.l.s4 839922192
    %v90 = vunpack.c.0.s8 %v89
    %v91 = vlaneseq
    %v92 = vshrl.u32 %v91, 7
    %v93 = vsub.s32 %v90, %v92
    %v94 = vrot.slane %v87, %v93
    %v96 = vmul.f32 %v29, %v94
    %v97 = vmul.f32 %v30, %v94
    %99 = vset.pattern.permute.xlu0 0
    %100 = vperm.xlu0 %99, %v83
    %v101 = vpop.permute.xlu0 %100
    %v103 = vunpack.c.l.s4 839922192
    %v104 = vunpack.c.0.s8 %v103
    %v105 = vlaneseq
    %v106 = vshrl.u32 %v105, 7
    %v107 = vsub.s32 %v104, %v106
    %v108 = vrot.slane %v101, %v107
    %v110 = vadd.f32 %v96, %v108
    %v111 = vadd.f32 %v97, %v108
    %112 = vst [vmem:[#allocation5] sm:$0xff] %v110
    %113 = vst [vmem:[#allocation5 + $0x8] sm:$0xff] %v111
    // Predicated region
    $region18: #{tpu_custom_call.1} parent=1 // pred_check
      _
    $region19: #{tpu_custom_call.1} parent=1 // pred_check_branch
      %115 = sbr.rel (0) target = $region21
    $region20: #{tpu_custom_call.1} parent=1 // pred_region
      %s117 = ssub.s32 256, 256
      %118 = vsyncadd [#allocation4], %s117
      %s119 = sshll.u32 [#allocation5], 4
      %s120 = int_to_ptr.vmem [resolvable:$true] %s119
      %125 = dma.vmem_to_hbm [thread:$0]  %s120, 256, %s3, [#allocation4], 128, 128, 8
    $region21: #{tpu_custom_call.1} parent=1 // pred_fallthru
      _
    // Predicated region
    $region22: #{tpu_custom_call.1} parent=1 // pred_check
      _
    $region23: #{tpu_custom_call.1} parent=1 // pred_check_branch
      %127 = sbr.rel (0) target = $region25
    $region24: #{tpu_custom_call.1} parent=1 // pred_region
      %128 = dma.done [#allocation4], 256
    $region25: #{tpu_custom_call.1} parent=1 // pred_fallthru
      _
    %129 = vsyncpa [#allocation3], 1
    %130 = vsyncpa [#allocation4], 1

</llo_original>
